<compile_context>
chip_gen: v7x
topology: tpu7x:2x2x1
jax: 0.10.0
libtpu: 0.0.40
codegen_flags: <defaults>
</compile_context>

<pallas_src>
import functools

import jax
import jax.numpy as jnp
import numpy as np
from jax import lax
from jax.experimental import pallas as pl
from jax.experimental.pallas import tpu as pltpu

EPS = 1e-9


# --------------------------------------------------------------------------
# Hardware-aware sizing helpers
# --------------------------------------------------------------------------
def _vmem_capacity_bytes() -> int:
    """Per-core VMEM capacity (falls back to the smallest generation, v7x)."""
    try:
        cap = getattr(pltpu.get_tpu_info(), "vmem_capacity_bytes", None)
        if cap:
            return int(cap)
    except Exception:
        pass
    return 64 * 1024 * 1024


def _sublane(itemsize: int) -> int:
    # 8 (f32), 16 (bf16), 32 (8-bit)
    return 8 * max(1, 4 // max(itemsize, 1))


def _plan_rows(n_rows: int, hw: int, itemsize: int, block_budget: int):
    """Row-tile plan for the 'whole H*W per block' path.

    Returns (tile_rows, y_transposed).  y_transposed=True means scale/bias are
    passed lane-dense as (2, B*C) blocks; it requires the lane dim (tile_rows)
    to be a multiple of 128 or the full B*C extent.
    """
    sub = _sublane(itemsize)
    rows_fit = max(block_budget // max(hw * itemsize, 1), 1)

    # Keep at least 2 grid steps when the data allows it so the "parallel"
    # grid axis can be sharded across v7x's two TensorCores (harmless extra
    # 0.35us step on single-core v5e/v6e).
    if n_rows >= 2 * sub:
        half = -(-n_rows // 2)
        rows_fit = min(rows_fit, -(-half // sub) * sub)

    if rows_fit >= n_rows:
        return n_rows, True                       # single full-dims block
    if rows_fit >= 128:
        return (rows_fit // 128) * 128, True      # lane-dense (2, T) y blocks
    # Tiny row tiles (very large H*W, still resident): keep (T, 2) y layout;
    # its lane padding is negligible at this size.
    return max((rows_fit // sub) * sub, sub), False


def _plan_hw(n_rows: int, hw: int, itemsize: int, block_budget: int):
    """(tile_rows, tile_hw) for the large-image path that tiles H*W."""
    sub = _sublane(itemsize)
    tile_rows = min(-(-n_rows // sub) * sub, 8 * sub)
    if n_rows >= 2 * sub:                          # let both v7x cores get rows
        half = -(-n_rows // 2)
        tile_rows = min(tile_rows, -(-half // sub) * sub)
    lanes_fit = max(block_budget // max(tile_rows * itemsize, 1), 128)
    tile_hw = (lanes_fit // 128) * 128
    tile_hw = min(tile_hw, -(-hw // 128) * 128)
    return tile_rows, tile_hw


# --------------------------------------------------------------------------
# Path A: whole H*W resident per block (typical generator feature maps)
# --------------------------------------------------------------------------
def _adain_rows_kernel(x_ref, y_ref, o_ref, *, hw, y_transposed):
    # x_ref: (T, HW) one (b, c) instance per row.
    # y_ref: (2, T) [scale; bias] lane-dense, or (T, 2) for tiny row tiles.
    inv_n = jnp.float32(1.0 / hw)
    # torch.std uses the unbiased estimator (ddof=1); hw == 1 -> NaN like torch.
    inv_nm1 = jnp.float32(1.0 / (hw - 1)) if hw > 1 else jnp.float32(jnp.inf)

    x = x_ref[...]                                  # native dtype; cast per-use
    mean = jnp.sum(x.astype(jnp.float32), axis=1, keepdims=True) * inv_n
    # Two-pass variance (numerically identical to torch.std), but the centered
    # copy is only an input to the reduction -- never reused for the output.
    d = x.astype(jnp.float32) - mean
    var = jnp.sum(d * d, axis=1, keepdims=True) * inv_nm1
    std = jnp.sqrt(var) + jnp.float32(EPS)

    if y_transposed:
        yt = y_ref[...].astype(jnp.float32).T       # (T, 2): one tiny XLU transpose
        ys, yb = yt[:, 0:1], yt[:, 1:2]
    else:
        ys = y_ref[:, 0:1].astype(jnp.float32)
        yb = y_ref[:, 1:2].astype(jnp.float32)

    a = ys / std                                    # per-row scale
    b = yb - mean * a                               # mean folded into per-row bias
    o_ref[...] = (x.astype(jnp.float32) * a + b).astype(o_ref.dtype)


# --------------------------------------------------------------------------
# Path B: large images -- tile H*W, stream stats (phase 0) then apply (phase 1)
# --------------------------------------------------------------------------
def _adain_hw_kernel(x_ref, y_ref, o_ref, sum_ref, sq_ref, *, hw, tile_hw, need_mask):
    p = pl.program_id(1)   # 0 = accumulate stats, 1 = write output
    j = pl.program_id(2)   # H*W tile index

    @pl.when((p == 0) & (j == 0))
    def _():
        sum_ref[...] = jnp.zeros_like(sum_ref)
        sq_ref[...] = jnp.zeros_like(sq_ref)

    @pl.when(p == 0)
    def _():
        xf = x_ref[...].astype(jnp.float32)
        if need_mask:  # partial H*W edge tile: zero the out-of-range columns
            col = j * tile_hw + lax.broadcasted_iota(jnp.int32, xf.shape, 1)
            xf = jnp.where(col < hw, xf, 0.0)
        sum_ref[...] += jnp.sum(xf, axis=1, keepdims=True)
        sq_ref[...] += jnp.sum(xf * xf, axis=1, keepdims=True)

    @pl.when(p == 1)
    def _():
        inv_n = jnp.float32(1.0 / hw)
        inv_nm1 = jnp.float32(1.0 / (hw - 1)) if hw > 1 else jnp.float32(jnp.inf)
        mean = sum_ref[...] * inv_n
        # One-pass (sum/sumsq) variance: required when streaming over H*W.
        # Clamp tiny negatives from cancellation; slightly less robust than the
        # two-pass form used in the resident path, fine for activation stats.
        var = (sq_ref[...] - jnp.float32(hw) * mean * mean) * inv_nm1
        var = jnp.maximum(var, 0.0)
        std = jnp.sqrt(var) + jnp.float32(EPS)
        ys = y_ref[:, 0:1].astype(jnp.float32)
        yb = y_ref[:, 1:2].astype(jnp.float32)
        a = ys / std
        b = yb - mean * a
        o_ref[...] = (x_ref[...].astype(jnp.float32) * a + b).astype(o_ref.dtype)


# --------------------------------------------------------------------------
# Wrapper
# --------------------------------------------------------------------------
def adain(x: jax.Array, y: jax.Array, *, block_budget_bytes=None, vmem_limit_bytes=None):
    """Pallas AdaIN.

    Args:
      x: images, shape [B, C, H, W] (NCHW, matching the PyTorch module).
      y: styles, shape [B, 2*C] (first C = scale, last C = bias).
    Returns:
      stylized images, shape [B, C, H, W], dtype of x.
    """
    B, C, H, W = x.shape
    assert y.shape == (B, 2 * C)
    HW, BC = H * W, B * C
    itemsize = jnp.dtype(x.dtype).itemsize

    cap = _vmem_capacity_bytes()
    # ~48 MiB on v7x (64 MiB physical), ~96 MiB on v5e/v6e (128 MiB physical).
    vmem_limit = int(vmem_limit_bytes or (3 * cap) // 4)
    # 4 * block (double-buffered x in + out) + y blocks + in-kernel temps < limit.
    block_budget = int(block_budget_bytes or vmem_limit // 6)

    x2d = x.reshape(BC, HW)
    y_s = y[:, :C].reshape(BC)
    y_b = y[:, C:].reshape(BC)

    sub = _sublane(itemsize)
    if sub * HW * itemsize <= block_budget:
        # ---- Path A: whole H*W rows per block ----
        tile_rows, y_t = _plan_rows(BC, HW, itemsize, block_budget)
        grid = pl.cdiv(BC, tile_rows)
        if y_t:
            y2 = jnp.stack([y_s, y_b], axis=0)                       # (2, BC) lane-dense
            y_spec = pl.BlockSpec((2, tile_rows), lambda i: (0, i))
        else:
            y2 = jnp.stack([y_s, y_b], axis=-1)                      # (BC, 2)
            y_spec = pl.BlockSpec((tile_rows, 2), lambda i: (i, 0))
        kernel = functools.partial(_adain_rows_kernel, hw=HW, y_transposed=y_t)
        # Note: pipeline_mode=pl.Buffered(3) on the x spec is a possible v7x
        # sweep once VMEM headroom is confirmed; left at the default depth here.
        out2d = pl.pallas_call(
            kernel,
            out_shape=jax.ShapeDtypeStruct((BC, HW), x.dtype),
            grid_spec=pltpu.PrefetchScalarGridSpec(
                num_scalar_prefetch=0,
                grid=(grid,),
                in_specs=[pl.BlockSpec((tile_rows, HW), lambda i: (i, 0)), y_spec],
                out_specs=pl.BlockSpec((tile_rows, HW), lambda i: (i, 0)),
            ),
            compiler_params=pltpu.CompilerParams(
                dimension_semantics=("parallel",),
                vmem_limit_bytes=vmem_limit,
            ),
        )(x2d, y2)
    else:
        # ---- Path B: a single row exceeds the block budget -> tile H*W ----
        tile_rows, tile_hw = _plan_hw(BC, HW, itemsize, block_budget)
        grid = (pl.cdiv(BC, tile_rows), 2, pl.cdiv(HW, tile_hw))
        y2 = jnp.stack([y_s, y_b], axis=-1)                          # (BC, 2), tiny
        kernel = functools.partial(
            _adain_hw_kernel, hw=HW, tile_hw=tile_hw, need_mask=(HW % tile_hw != 0))
        out2d = pl.pallas_call(
            kernel,
            out_shape=jax.ShapeDtypeStruct((BC, HW), x.dtype),
            grid_spec=pltpu.PrefetchScalarGridSpec(
                num_scalar_prefetch=0,
                grid=grid,
                in_specs=[
                    pl.BlockSpec((tile_rows, tile_hw), lambda i, p, j: (i, j)),
                    pl.BlockSpec((tile_rows, 2), lambda i, p, j: (i, 0)),
                ],
                # Phase 0 pins the output at hw-block 0; that block is the first
                # one phase 1 overwrites, so no stale data is ever flushed and
                # output HBM traffic stays at exactly one write per element.
                out_specs=pl.BlockSpec((tile_rows, tile_hw), lambda i, p, j: (i, j * p)),
                scratch_shapes=[
                    pltpu.VMEM((tile_rows, 1), jnp.float32),   # running sum
                    pltpu.VMEM((tile_rows, 1), jnp.float32),   # running sum of squares
                ],
            ),
            compiler_params=pltpu.CompilerParams(
                dimension_semantics=("parallel", "arbitrary", "arbitrary"),
                vmem_limit_bytes=vmem_limit,
            ),
        )(x2d, y2)

    return out2d.reshape(B, C, H, W)


# --------------------------------------------------------------------------
# Pure-JAX reference (torch.std -> ddof=1) and self-test
# --------------------------------------------------------------------------
def _adain_ref(x, y):
    C = x.shape[1]
    mean = jnp.mean(x, axis=(2, 3), keepdims=True)
    std = jnp.std(x, axis=(2, 3), keepdims=True, ddof=1) + EPS
    xn = (x - mean) / std
    return y[:, :C][:, :, None, None] * xn + y[:, C:][:, :, None, None]


if __name__ == "__main__":
    key = jax.random.PRNGKey(0)
    kx, ky = jax.random.split(key)

    # Primary check: Path A, single full block, lane-dense (2, B*C) style input.
    B, C, H, W = 2, 4, 16, 16
    x = jax.random.normal(kx, (B, C, H, W), dtype=jnp.float32)
    y = jax.random.normal(ky, (B, 2 * C), dtype=jnp.float32)
    out = jax.block_until_ready(adain(x, y))
    assert out.shape == (B, C, H, W)
    np.testing.assert_allclose(np.asarray(out), np.asarray(_adain_ref(x, y)),
                               atol=1e-5, rtol=1e-5)

    # Multi-step Path A (small row tiles, (B*C, 2) style layout, 2 grid steps).
    x2 = jax.random.normal(kx, (2, 16, 16, 16), dtype=jnp.float32)
    y2 = jax.random.normal(ky, (2, 32), dtype=jnp.float32)
    out2 = jax.block_until_ready(adain(x2, y2))
    np.testing.assert_allclose(np.asarray(out2), np.asarray(_adain_ref(x2, y2)),
                               atol=1e-5, rtol=1e-5)

    # Large-image Path B (H*W tiling with running stats), forced via a tiny budget.
    x3 = jax.random.normal(kx, (2, 4, 15, 15), dtype=jnp.float32)
    y3 = jax.random.normal(ky, (2, 8), dtype=jnp.float32)
    out3 = jax.block_until_ready(adain(x3, y3, block_budget_bytes=4096))
    np.testing.assert_allclose(np.asarray(out3), np.asarray(_adain_ref(x3, y3)),
                               atol=1e-5, rtol=1e-5)

    print("KERNEL_OK")
</pallas_src>

<mosaic_0001>
module attributes {stable_mosaic.version = 11 : i64} {
  func.func @_adain_rows_kernel(%arg0: i32, %arg1: memref<8x256xf32, #tpu.memory_space<vmem>>, %arg2: memref<2x8xf32, #tpu.memory_space<vmem>>, %arg3: memref<8x256xf32, #tpu.memory_space<vmem>>) attributes {dimension_semantics = [#tpu.dimension_semantics<parallel>], iteration_bounds = array<i64: 1>, scalar_prefetch = 0 : i64, scratch_operands = 0 : i64, tpu.core_type = #tpu.core_type<tc>, window_params = [{transform_indices = @transform_0, window_bounds = array<i64: 8, 256>}, {transform_indices = @transform_1, window_bounds = array<i64: 2, 8>}, {transform_indices = @transform_2, window_bounds = array<i64: 8, 256>}]} {
    %c0 = arith.constant 0 : index
    %c0_0 = arith.constant 0 : index
    %0 = vector.load %arg1[%c0, %c0_0] : memref<8x256xf32, #tpu.memory_space<vmem>>, vector<8x256xf32>
    %cst = arith.constant dense<0.000000e+00> : vector<8xf32>
    %1 = vector.multi_reduction <add>, %0, %cst [1] : vector<8x256xf32> to vector<8xf32>
    %2 = vector.shape_cast %1 : vector<8xf32> to vector<8x1xf32>
    %cst_1 = arith.constant 3.906250e-03 : f32
    %3 = vector.broadcast %cst_1 : f32 to vector<8x1xf32>
    %4 = arith.mulf %2, %3 : vector<8x1xf32>
    %5 = vector.broadcast %4 : vector<8x1xf32> to vector<8x256xf32>
    %6 = arith.subf %0, %5 : vector<8x256xf32>
    %7 = arith.mulf %6, %6 : vector<8x256xf32>
    %cst_2 = arith.constant dense<0.000000e+00> : vector<8xf32>
    %8 = vector.multi_reduction <add>, %7, %cst_2 [1] : vector<8x256xf32> to vector<8xf32>
    %9 = vector.shape_cast %8 : vector<8xf32> to vector<8x1xf32>
    %cst_3 = arith.constant 0.00392156886 : f32
    %10 = vector.broadcast %cst_3 : f32 to vector<8x1xf32>
    %11 = arith.mulf %9, %10 : vector<8x1xf32>
    %12 = math.sqrt %11 : vector<8x1xf32>
    %cst_4 = arith.constant 9.99999971E-10 : f32
    %13 = vector.broadcast %cst_4 : f32 to vector<8x1xf32>
    %14 = arith.addf %12, %13 : vector<8x1xf32>
    %c0_5 = arith.constant 0 : index
    %c0_6 = arith.constant 0 : index
    %15 = vector.load %arg2[%c0_5, %c0_6] : memref<2x8xf32, #tpu.memory_space<vmem>>, vector<2x8xf32>
    %16 = tpu.transpose %15, [1, 0] : vector<2x8xf32> -> vector<8x2xf32>
    %17 = vector.extract_strided_slice %16 {offsets = [0, 0], sizes = [8, 1], strides = [1, 1]} : vector<8x2xf32> to vector<8x1xf32>
    %18 = vector.extract_strided_slice %16 {offsets = [0, 1], sizes = [8, 1], strides = [1, 1]} : vector<8x2xf32> to vector<8x1xf32>
    %19 = arith.divf %17, %14 : vector<8x1xf32>
    %20 = arith.mulf %4, %19 : vector<8x1xf32>
    %21 = arith.subf %18, %20 : vector<8x1xf32>
    %22 = vector.broadcast %19 : vector<8x1xf32> to vector<8x256xf32>
    %23 = arith.mulf %0, %22 : vector<8x256xf32>
    %24 = vector.broadcast %21 : vector<8x1xf32> to vector<8x256xf32>
    %25 = arith.addf %23, %24 : vector<8x256xf32>
    %c0_7 = arith.constant 0 : index
    %c0_8 = arith.constant 0 : index
    %26 = vector.load %arg3[%c0_7, %c0_8] : memref<8x256xf32, #tpu.memory_space<vmem>>, vector<8x256xf32>
    tpu.vector_store %arg3[%c0_7, %c0_8], %25 {strides = array<i32>} : memref<8x256xf32, #tpu.memory_space<vmem>>, vector<8x256xf32>,
    return
  }
  func.func @transform_0(%arg0: i32) -> (i32, i32) {
    %c0_i32 = arith.constant 0 : i32
    %c0_i32_0 = arith.constant 0 : i32
    return %arg0, %c0_i32 : i32, i32
  }
  func.func @transform_1(%arg0: i32) -> (i32, i32) {
    %c0_i32 = arith.constant 0 : i32
    %c0_i32_0 = arith.constant 0 : i32
    return %c0_i32, %arg0 : i32, i32
  }
  func.func @transform_2(%arg0: i32) -> (i32, i32) {
    %c0_i32 = arith.constant 0 : i32
    %c0_i32_0 = arith.constant 0 : i32
    return %arg0, %c0_i32 : i32, i32
  }
}

</mosaic_0001>

<llo_original>
// kernel: tpu_custom_call.1
$region0: #{tpu_custom_call.1}
  #allocation0 [shape = 'u32[]', space=smem, size = 0x4, offset = 0x4, fixed_abs, tag = 'smem constant byte address 0x4 - core index']
  #allocation1 [shape = 'u32[144,128]{1,0:T(1,128)}', space=vmem, size = 0x12000, scoped, tag = 'internal scratch']
  %s0 = inlined_call_operand.hbm [shape: f32[8,256], index: 0, kind: input, shape index: {}]
  %s1 = inlined_call_operand.vmem [shape: f32[2,8], index: 1, kind: input, shape index: {}]
  %s2 = inlined_call_operand.hbm [shape: f32[8,256], index: 2, kind: output, shape index: {}]
  %s3 = sld [smem:[#allocation0]]
  $region22: #{tpu_custom_call.1} parent=0
    _
  %s5 = ssub.s32 1, %s3
  %s6 = scalar_select 0, %s5, %s3
  $region1: #{tpu_custom_call.1} parent=0
    #allocation2 [shape = 'u8[8192]{0}', space=vmem, size = 0x2000, scoped, tag = 'input window, operand 0, single buffered']
    #allocation3 [shape = 's32[1]{0}', space=sflag, size = 0x4, scoped, tag = 'scoped memory for tpu_custom_call.1']
    #allocation4 [shape = 's32[1]{0}', space=sflag, size = 0x4, scoped, tag = 'scoped memory for tpu_custom_call.1']
    #allocation5 [shape = 'u8[8192]{0}', space=vmem, size = 0x2000, scoped, tag = 'output window, operand 0, single buffered']
    %7 = vsyncpa [#allocation3], 0
    %8 = vsyncpa [#allocation4], 0
    // Predicated region
    $region2: #{tpu_custom_call.1} parent=1 // pred_check
      _
    $region3: #{tpu_custom_call.1} parent=1 // pred_check_branch
      %10 = sbr.rel (0) target = $region5
    $region4: #{tpu_custom_call.1} parent=1 // pred_region
      %s12 = ssub.s32 256, 256
      %13 = vsyncadd [#allocation3], %s12
      %s15 = sshll.u32 [#allocation2], 4
      %s16 = int_to_ptr.vmem [resolvable:$true] %s15
      %18 = dma.hbm_to_vmem [thread:$0]  %s0, 256, %s16, [#allocation3]
    $region5: #{tpu_custom_call.1} parent=1 // pred_fallthru
      _
    // Predicated region
    $region6: #{tpu_custom_call.1} parent=1 // pred_check
      _
    $region7: #{tpu_custom_call.1} parent=1 // pred_check_branch
      %20 = sbr.rel (0) target = $region9
    $region8: #{tpu_custom_call.1} parent=1 // pred_region
      _
    $region9: #{tpu_custom_call.1} parent=1 // pred_fallthru
      _
    // Predicated region
    $region10: #{tpu_custom_call.1} parent=1 // pred_check
      _
    $region11: #{tpu_custom_call.1} parent=1 // pred_check_branch
      %22 = sbr.rel (0) target = $region13
    $region12: #{tpu_custom_call.1} parent=1 // pred_region
      %23 = dma.done [#allocation3], 256
    $region13: #{tpu_custom_call.1} parent=1 // pred_fallthru
      _
    %v24 = vld [vmem:[#allocation2] sm:$0xff]
    %v25 = vld [vmem:[#allocation2 + $0x8] sm:$0xff]
    %v26 = vadd.f32 %v24, %v25
    %27 = vadd.xlane.f32.xlu0 %v26
    %v28 = vpop.xlane.xlu0 %27
    %v29 = vmul.f32 %v28, 0.00390625
    %v30 = vsub.f32 %v24, %v29
    %v31 = vsub.f32 %v25, %v29
    %v32 = vmul.f32 %v30, %v30
    %v33 = vmul.f32 %v31, %v31
    %v34 = vadd.f32 %v32, %v33
    %35 = vadd.xlane.f32.xlu0 %v34
    %v36 = vpop.xlane.xlu0 %35
    %v37 = vmul.f32 %v36, 0.003921569
    %v38 = vrsqrt.pop %v37
    %v39 = vmul.f32 %v37, %v38
    %vm40 = vcmp.eq.f32.partialorder %v37, inf
    %v41 = vsel %vm40, %v37, %v39
    %vm42 = vcmp.eq.f32.partialorder %v37, 0.0
    %v43 = vand.u32 %v37, 2147483648
    %v44 = vsel %vm42, %v43, %v41
    %v45 = vadd.f32 %v44, 1e-09
    %v46 = vld [vmem:[%s1] sm:$0x3]
    %47 = vxpose.xlu0.b32.start [1/16] %v46, 128
    %48 = vxpose.xlu0.b32.cont [2/16] 0.0, 128
    %49 = vxpose.xlu0.b32.cont [3/16] 0.0, 128
    %50 = vxpose.xlu0.b32.cont [4/16] 0.0, 128
    %51 = vxpose.xlu0.b32.cont [5/16] 0.0, 128
    %52 = vxpose.xlu0.b32.cont [6/16] 0.0, 128
    %53 = vxpose.xlu0.b32.cont [7/16] 0.0, 128
    %54 = vxpose.xlu0.b32.cont [8/16] 0.0, 128
    %55 = vxpose.xlu0.b32.cont [9/16] 0.0, 128
    %56 = vxpose.xlu0.b32.cont [10/16] 0.0, 128
    %57 = vxpose.xlu0.b32.cont [11/16] 0.0, 128
    %58 = vxpose.xlu0.b32.cont [12/16] 0.0, 128
    %59 = vxpose.xlu0.b32.cont [13/16] 0.0, 128
    %60 = vxpose.xlu0.b32.cont [14/16] 0.0, 128
    %61 = vxpose.xlu0.b32.cont [15/16] 0.0, 128
    %62 = vxpose.xlu0.b32.end [16/16] 0.0, 128
    %v63 = vpop.trf.xlu0
    %v64 = vpop.trf.xlu0
    %v65 = vpop.trf.xlu0
    %v66 = vpop.trf.xlu0
    %v67 = vpop.trf.xlu0
    %v68 = vpop.trf.xlu0
    %v69 = vpop.trf.xlu0
    %v70 = vpop.trf.xlu0
    %v71 = vpop.trf.xlu0
    %v72 = vpop.trf.xlu0
    %v73 = vpop.trf.xlu0
    %v74 = vpop.trf.xlu0
    %v75 = vpop.trf.xlu0
    %v76 = vpop.trf.xlu0
    %v77 = vpop.trf.xlu0
    %v78 = vpop.trf.xlu0
    %v79 = vrcp.pop %v45
    %v80 = vmul.f32 %v63, %v79
    %v81 = vmul.f32 %v29, %v80
    %83 = vrot.lane.b32.xlu0 %v81, 1
    %v84 = vpop.permute.xlu0 %83
    %v86 = vsub.f32 %v63, %v84
    %88 = vset.pattern.permute.xlu0 0
    %89 = vperm.xlu0 %88, %v80
    %v90 = vpop.permute.xlu0 %89
    %v92 = vmul.f32 %v24, %v90
    %v93 = vmul.f32 %v25, %v90
    %95 = vset.pattern.permute.xlu0 1
    %96 = vperm.xlu0 %95, %v86
    %v97 = vpop.permute.xlu0 %96
    %v99 = vadd.f32 %v92, %v97
    %v100 = vadd.f32 %v93, %v97
    %101 = vst [vmem:[#allocation5] sm:$0xff] %v99
    %102 = vst [vmem:[#allocation5 + $0x8] sm:$0xff] %v100
    // Predicated region
    $region14: #{tpu_custom_call.1} parent=1 // pred_check
      _
    $region15: #{tpu_custom_call.1} parent=1 // pred_check_branch
      %104 = sbr.rel (0) target = $region17
    $region16: #{tpu_custom_call.1} parent=1 // pred_region
      %s106 = ssub.s32 256, 256
      %107 = vsyncadd [#allocation4], %s106
      %s109 = sshll.u32 [#allocation5], 4
      %s110 = int_to_ptr.vmem [resolvable:$true] %s109
      %112 = dma.vmem_to_hbm [thread:$0]  %s110, 256, %s2, [#allocation4]
    $region17: #{tpu_custom_call.1} parent=1 // pred_fallthru
      _
    // Predicated region
    $region18: #{tpu_custom_call.1} parent=1 // pred_check
      _
    $region19: #{tpu_custom_call.1} parent=1 // pred_check_branch
      %114 = sbr.rel (0) target = $region21
    $region20: #{tpu_custom_call.1} parent=1 // pred_region
      %115 = dma.done [#allocation4], 256
    $region21: #{tpu_custom_call.1} parent=1 // pred_fallthru
      _
    %116 = vsyncpa [#allocation3], 1
    %117 = vsyncpa [#allocation4], 1

</llo_original>
